<compile_context>
chip_gen: v5e
topology: v5e:2x2
jax: 0.10.0
libtpu: 0.0.40
codegen_flags: <defaults>
</compile_context>

<pallas_src>
import functools

import jax
import jax.numpy as jnp
from jax.experimental import pallas as pl
from jax.experimental.pallas import tpu as pltpu


def _round_up(x, m):
    return (x + m - 1) // m * m


# --------------------------------------------------------------------------- kernels
def _ffn_kernel_acc(x_ref, w1_ref, b1_ref, w2_ref, b2_ref, o_ref, acc_ref, *,
                    compute_dtype):
    """Variant with a separate f32 accumulator (used when out dtype != f32).

    Grid: (row_tile i [parallel], hidden_panel k [arbitrary/reduction]).
      x_ref:  (tm, ext_p)   row tile of flattened input
      w1_ref: (ext_p, tk)   hidden-panel of fc1 weight
      b1_ref: (1, tk)       matching fc1 bias panel
      w2_ref: (tk, ext_p)   hidden-panel of fc2 weight
      b2_ref: (1, ext_p)    fc2 bias (tiny, constant)
      o_ref:  (tm, ext_p)   output tile (resident across k)
      acc_ref:(tm, ext_p)   f32 fc2 accumulator scratch
    """
    k = pl.program_id(1)

    @pl.when(k == 0)
    def _():
        acc_ref[...] = jnp.zeros_like(acc_ref)

    x = x_ref[...]
    w1 = w1_ref[...]
    w2 = w2_ref[...]
    if compute_dtype is not None:
        x = x.astype(compute_dtype)
        w1 = w1.astype(compute_dtype)
        w2 = w2.astype(compute_dtype)

    # fc1 panel + bias + ReLU, f32 accumulation on the MXU.
    h = jnp.dot(x, w1, preferred_element_type=jnp.float32)
    h = jnp.maximum(h + b1_ref[...].astype(jnp.float32), 0.0)
    h = h.astype(compute_dtype if compute_dtype is not None else w2.dtype)

    # fc2 partial product for this hidden panel, accumulated in f32.
    acc_ref[...] += jnp.dot(h, w2, preferred_element_type=jnp.float32)

    @pl.when(k == pl.num_programs(1) - 1)
    def _():
        o_ref[...] = (acc_ref[...] + b2_ref[...].astype(jnp.float32)).astype(
            o_ref.dtype)


def _ffn_kernel_f32(x_ref, w1_ref, b1_ref, w2_ref, b2_ref, o_ref, *,
                    compute_dtype):
    """f32-output variant: accumulate directly into the resident output block
    (saves tm*ext_p*4 bytes of VMEM vs. a separate scratch)."""
    k = pl.program_id(1)

    @pl.when(k == 0)
    def _():
        o_ref[...] = jnp.zeros_like(o_ref)

    x = x_ref[...]
    w1 = w1_ref[...]
    w2 = w2_ref[...]
    if compute_dtype is not None:
        x = x.astype(compute_dtype)
        w1 = w1.astype(compute_dtype)
        w2 = w2.astype(compute_dtype)

    h = jnp.dot(x, w1, preferred_element_type=jnp.float32)
    h = jnp.maximum(h + b1_ref[...].astype(jnp.float32), 0.0)
    if compute_dtype is not None:
        h = h.astype(compute_dtype)
    o_ref[...] += jnp.dot(h, w2, preferred_element_type=jnp.float32)

    @pl.when(k == pl.num_programs(1) - 1)
    def _():
        o_ref[...] += b2_ref[...].astype(jnp.float32)


# --------------------------------------------------------------------------- tiling
def _vmem_bytes(tm, tk, ext_p, in_isz, w_isz, out_isz, acc_separate):
    """Estimated VMEM footprint of the auto-pipelined kernel (double-buffered
    inputs/outputs + accumulator + fc1 intermediate)."""
    b = 2 * tm * ext_p * in_isz          # x row tile
    b += 2 * ext_p * tk * w_isz          # W1 hidden panel
    b += 2 * tk * w_isz                  # b1 panel
    b += 2 * tk * ext_p * w_isz          # W2 hidden panel
    b += 2 * ext_p * w_isz               # b2
    b += 2 * tm * ext_p * out_isz        # output tile
    if acc_separate:
        b += tm * ext_p * 4              # f32 accumulator scratch
    b += tm * tk * 4                     # fc1 intermediate (f32)
    return b


def _choose_tiles(M, ext_p, itl_p, in_isz, w_isz, out_isz, acc_separate):
    try:
        vmem_cap = int(pltpu.get_tpu_info().vmem_capacity_bytes)
    except Exception:
        vmem_cap = 64 * 1024 * 1024      # conservative fallback (v7x per-TC)
    # Never hand the whole physical VMEM to the pipeline: leave headroom for
    # compiler-internal scratch and semaphores.
    budget = int(0.70 * vmem_cap)
    small_vmem = vmem_cap < 100 * 1024 * 1024   # v7x-class (64 MiB per TC)

    # Hidden-dim panel width: the largest multiple of 128 that divides the
    # (already 128-padded) hidden dim - no extra weight padding, and small
    # FFNs collapse to a single k-step (no accumulator RMW traffic).
    tk_cap = min(512 if small_vmem else 1024, itl_p)
    tk = 128
    for cand in range(tk_cap, 127, -128):
        if itl_p % cand == 0:
            tk = cand
            break

    # Row tile: weights are re-streamed once per row tile, so arithmetic
    # intensity ~ tm flops/byte.  Target compute-bound on each generation.
    tm_target = 512 if small_vmem else 640
    tm = min(tm_target, _round_up(M, 8))

    # v7x has 2 TensorCores sharing the chip: if the whole problem would fit a
    # single row tile, split it in two so the second core gets work.
    if small_vmem and tm >= M and M >= 16:
        tm = _round_up((M + 1) // 2, 8)

    def fits(tm_, tk_):
        return _vmem_bytes(tm_, tk_, ext_p, in_isz, w_isz, out_isz,
                           acc_separate) <= budget

    while tm > 128 and not fits(tm, tk):
        tm -= 128
    while tk > 128 and not fits(tm, tk):
        nxt = 128
        for cand in range(tk - 128, 127, -128):
            if itl_p % cand == 0:
                nxt = cand
                break
        tk = nxt
    while tm > 8 and not fits(tm, tk):
        tm = max(8, (tm // 2) // 8 * 8)

    return tm, tk, budget


# --------------------------------------------------------------------------- forward
@functools.partial(jax.jit, static_argnames=("compute_dtype",))
def _ffn_forward_2d(x2d, w1_p, b1_p, w2_p, b2_p, compute_dtype=None):
    M, ext = x2d.shape
    ext_p, itl_p = w1_p.shape

    in_isz = jnp.dtype(x2d.dtype).itemsize
    w_isz = jnp.dtype(w1_p.dtype).itemsize
    out_dtype = x2d.dtype
    out_isz = in_isz
    acc_separate = out_dtype != jnp.float32

    tm, tk, vmem_budget = _choose_tiles(M, ext_p, itl_p, in_isz, w_isz,
                                        out_isz, acc_separate)
    m_p = _round_up(M, tm)
    # Only the activations are padded per call; weights were padded once.
    x_p = jnp.pad(x2d, ((0, m_p - M), (0, ext_p - ext)))

    grid = (m_p // tm, itl_p // tk)
    n_row_tiles = grid[0]

    if acc_separate:
        kernel = functools.partial(_ffn_kernel_acc, compute_dtype=compute_dtype)
        scratch_shapes = [pltpu.VMEM((tm, ext_p), jnp.float32)]
    else:
        kernel = functools.partial(_ffn_kernel_f32, compute_dtype=compute_dtype)
        scratch_shapes = []

    cost = pl.CostEstimate(
        flops=int(4 * m_p * ext_p * itl_p),          # two matmuls (2 flops/MAC)
        transcendentals=0,
        bytes_accessed=int(
            m_p * ext_p * in_isz                      # x read
            + n_row_tiles * 2 * ext_p * itl_p * w_isz  # W1+W2 streamed per row tile
            + n_row_tiles * (itl_p + ext_p) * w_isz    # biases
            + m_p * ext_p * out_isz),                  # output write
    )

    out = pl.pallas_call(
        kernel,
        out_shape=jax.ShapeDtypeStruct((m_p, ext_p), out_dtype),
        grid_spec=pltpu.PrefetchScalarGridSpec(
            num_scalar_prefetch=0,
            grid=grid,
            in_specs=[
                pl.BlockSpec((tm, ext_p), lambda i, k: (i, 0)),   # x row tile
                pl.BlockSpec((ext_p, tk), lambda i, k: (0, k)),   # W1 panel
                pl.BlockSpec((1, tk), lambda i, k: (0, k)),       # b1 panel
                pl.BlockSpec((tk, ext_p), lambda i, k: (k, 0)),   # W2 panel
                pl.BlockSpec((1, ext_p), lambda i, k: (0, 0)),    # b2 (const)
            ],
            out_specs=pl.BlockSpec((tm, ext_p), lambda i, k: (i, 0)),
            scratch_shapes=scratch_shapes,
        ),
        compiler_params=pltpu.CompilerParams(
            dimension_semantics=("parallel", "arbitrary"),
            vmem_limit_bytes=int(vmem_budget),
        ),
        cost_estimate=cost,
    )(x_p, w1_p, b1_p, w2_p, b2_p)

    return out[:M, :ext]


def prepare_ffn_params(w1, b1, w2, b2):
    """Pad parameters to 128-aligned feature dims ONCE (not per forward call).

    w1: (external_dim, internal_dim)   (transpose of torch fc1.weight)
    b1: (internal_dim,) or (1, internal_dim)
    w2: (internal_dim, external_dim)   (transpose of torch fc2.weight)
    b2: (external_dim,) or (1, external_dim)
    """
    ext, itl = w1.shape
    ext_p = _round_up(ext, 128)
    itl_p = _round_up(itl, 128)
    w1_p = jnp.pad(w1, ((0, ext_p - ext), (0, itl_p - itl)))
    b1_p = jnp.pad(jnp.reshape(b1, (1, itl)), ((0, 0), (0, itl_p - itl)))
    w2_p = jnp.pad(w2, ((0, itl_p - itl), (0, ext_p - ext)))
    b2_p = jnp.pad(jnp.reshape(b2, (1, ext)), ((0, 0), (0, ext_p - ext)))
    return w1_p, b1_p, w2_p, b2_p


def ffn_forward(x, params, compute_dtype=None):
    """fc2(relu(fc1(x))) over the last dim, matching the PyTorch module.

    params: output of prepare_ffn_params (already 128-padded weights/biases).
    compute_dtype: optionally force matmul operand dtype (e.g. jnp.bfloat16 on
      v5e, where only the bf16 MXU path is fast).  None keeps input dtype.
    """
    orig_shape = x.shape
    x2d = x.reshape(-1, orig_shape[-1])
    out = _ffn_forward_2d(x2d, *params, compute_dtype=compute_dtype)
    return out.reshape(orig_shape)


def init_ffn_params(key, external_dim, internal_dim, dtype=jnp.float32):
    """Deterministic init matching torch.nn.Linear's U(-1/sqrt(fan_in), ...)."""
    k1, k2, k3, k4 = jax.random.split(key, 4)
    bound1 = 1.0 / (external_dim ** 0.5)
    bound2 = 1.0 / (internal_dim ** 0.5)
    # Stored as (in_dim, out_dim), i.e. transpose of torch's (out, in) weight.
    w1 = jax.random.uniform(k1, (external_dim, internal_dim), dtype,
                            minval=-bound1, maxval=bound1)
    b1 = jax.random.uniform(k2, (1, internal_dim), dtype,
                            minval=-bound1, maxval=bound1)
    w2 = jax.random.uniform(k3, (internal_dim, external_dim), dtype,
                            minval=-bound2, maxval=bound2)
    b2 = jax.random.uniform(k4, (1, external_dim), dtype,
                            minval=-bound2, maxval=bound2)
    return w1, b1, w2, b2


if __name__ == "__main__":
    external_dim = 32
    internal_dim = 64
    batch, seq = 2, 8

    key = jax.random.PRNGKey(0)
    kx, kp = jax.random.split(key)
    x = jax.random.normal(kx, (batch, seq, external_dim), jnp.float32)
    w1, b1, w2, b2 = init_ffn_params(kp, external_dim, internal_dim)
    params = prepare_ffn_params(w1, b1, w2, b2)   # pad weights once, not per call

    out = ffn_forward(x, params)
    out = jax.block_until_ready(out)

    # Pure-JAX reference of the same math.
    ref = jnp.maximum(x.reshape(-1, external_dim) @ w1 + b1, 0.0) @ w2 + b2
    ref = ref.reshape(x.shape)
    assert out.shape == x.shape
    assert jnp.allclose(out, ref, atol=1e-5, rtol=1e-5)

    print("KERNEL_OK")
</pallas_src>

<mosaic_0001>
module attributes {stable_mosaic.version = 11 : i64} {
  func.func @_ffn_kernel_f32(%arg0: i32, %arg1: i32, %arg2: memref<8x128xf32, #tpu.memory_space<vmem>>, %arg3: memref<128x128xf32, #tpu.memory_space<vmem>>, %arg4: memref<1x128xf32, #tpu.memory_space<vmem>>, %arg5: memref<128x128xf32, #tpu.memory_space<vmem>>, %arg6: memref<1x128xf32, #tpu.memory_space<vmem>>, %arg7: memref<8x128xf32, #tpu.memory_space<vmem>>) attributes {dimension_semantics = [#tpu.dimension_semantics<parallel>, #tpu.dimension_semantics<arbitrary>], iteration_bounds = array<i64: 2, 1>, scalar_prefetch = 0 : i64, scratch_operands = 0 : i64, tpu.core_type = #tpu.core_type<tc>, window_params = [{transform_indices = @transform_0, window_bounds = array<i64: 8, 128>}, {transform_indices = @transform_1, window_bounds = array<i64: 128, 128>}, {transform_indices = @transform_2, window_bounds = array<i64: 1, 128>}, {transform_indices = @transform_3, window_bounds = array<i64: 128, 128>}, {pipeline_mode = #tpu.pipeline_mode<synchronous>, transform_indices = @transform_4, window_bounds = array<i64: 1, 128>}, {transform_indices = @transform_5, window_bounds = array<i64: 8, 128>}]} {
    %c0_i32 = arith.constant 0 : i32
    %0 = arith.cmpi eq, %arg1, %c0_i32 : i32
    %1 = arith.extui %0 : i1 to i32
    %c0_i32_0 = arith.constant 0 : i32
    %2 = arith.cmpi ne, %1, %c0_i32_0 : i32
    scf.if %2 {
      %cst_16 = arith.constant 0.000000e+00 : f32
      %19 = vector.broadcast %cst_16 : f32 to vector<8x128xf32>
      %c0_17 = arith.constant 0 : index
      %c0_18 = arith.constant 0 : index
      %20 = vector.load %arg7[%c0_17, %c0_18] : memref<8x128xf32, #tpu.memory_space<vmem>>, vector<8x128xf32>
      tpu.vector_store %arg7[%c0_17, %c0_18], %19 {strides = array<i32>} : memref<8x128xf32, #tpu.memory_space<vmem>>, vector<8x128xf32>,
    } else {
    }
    %c0 = arith.constant 0 : index
    %c0_1 = arith.constant 0 : index
    %3 = vector.load %arg2[%c0, %c0_1] : memref<8x128xf32, #tpu.memory_space<vmem>>, vector<8x128xf32>
    %c0_2 = arith.constant 0 : index
    %c0_3 = arith.constant 0 : index
    %4 = vector.load %arg3[%c0_2, %c0_3] : memref<128x128xf32, #tpu.memory_space<vmem>>, vector<128x128xf32>
    %c0_4 = arith.constant 0 : index
    %c0_5 = arith.constant 0 : index
    %5 = vector.load %arg5[%c0_4, %c0_5] : memref<128x128xf32, #tpu.memory_space<vmem>>, vector<128x128xf32>
    %cst = arith.constant dense<0.000000e+00> : vector<8x128xf32>
    %6 = tpu.matmul %3, %4, %cst {dimension_numbers = #tpu.dot_dimension_numbers<[1], [0], [0], [1], [0, 0, 1, 1], [], []>} : vector<8x128xf32>, vector<128x128xf32>, vector<8x128xf32> -> vector<8x128xf32>
    %c0_6 = arith.constant 0 : index
    %c0_7 = arith.constant 0 : index
    %7 = vector.load %arg4[%c0_6, %c0_7] : memref<1x128xf32, #tpu.memory_space<vmem>>, vector<1x128xf32>
    %8 = vector.broadcast %7 : vector<1x128xf32> to vector<8x128xf32>
    %9 = arith.addf %6, %8 : vector<8x128xf32>
    %cst_8 = arith.constant 0.000000e+00 : f32
    %10 = vector.broadcast %cst_8 : f32 to vector<8x128xf32>
    %11 = arith.maximumf %9, %10 : vector<8x128xf32>
    %c0_9 = arith.constant 0 : index
    %c0_10 = arith.constant 0 : index
    %12 = vector.load %arg7[%c0_9, %c0_10] : memref<8x128xf32, #tpu.memory_space<vmem>>, vector<8x128xf32>
    %cst_11 = arith.constant dense<0.000000e+00> : vector<8x128xf32>
    %13 = tpu.matmul %11, %5, %cst_11 {dimension_numbers = #tpu.dot_dimension_numbers<[1], [0], [0], [1], [0, 0, 1, 1], [], []>} : vector<8x128xf32>, vector<128x128xf32>, vector<8x128xf32> -> vector<8x128xf32>
    %14 = arith.addf %12, %13 : vector<8x128xf32>
    %c0_12 = arith.constant 0 : index
    %c0_13 = arith.constant 0 : index
    %15 = vector.load %arg7[%c0_12, %c0_13] : memref<8x128xf32, #tpu.memory_space<vmem>>, vector<8x128xf32>
    tpu.vector_store %arg7[%c0_12, %c0_13], %14 {strides = array<i32>} : memref<8x128xf32, #tpu.memory_space<vmem>>, vector<8x128xf32>,
    %c0_i32_14 = arith.constant 0 : i32
    %16 = arith.cmpi eq, %arg1, %c0_i32_14 : i32
    %17 = arith.extui %16 : i1 to i32
    %c0_i32_15 = arith.constant 0 : i32
    %18 = arith.cmpi ne, %17, %c0_i32_15 : i32
    scf.if %18 {
      %c0_16 = arith.constant 0 : index
      %c0_17 = arith.constant 0 : index
      %19 = vector.load %arg7[%c0_16, %c0_17] : memref<8x128xf32, #tpu.memory_space<vmem>>, vector<8x128xf32>
      %c0_18 = arith.constant 0 : index
      %c0_19 = arith.constant 0 : index
      %20 = vector.load %arg6[%c0_18, %c0_19] : memref<1x128xf32, #tpu.memory_space<vmem>>, vector<1x128xf32>
      %21 = vector.broadcast %20 : vector<1x128xf32> to vector<8x128xf32>
      %22 = arith.addf %19, %21 : vector<8x128xf32>
      %c0_20 = arith.constant 0 : index
      %c0_21 = arith.constant 0 : index
      %23 = vector.load %arg7[%c0_20, %c0_21] : memref<8x128xf32, #tpu.memory_space<vmem>>, vector<8x128xf32>
      tpu.vector_store %arg7[%c0_20, %c0_21], %22 {strides = array<i32>} : memref<8x128xf32, #tpu.memory_space<vmem>>, vector<8x128xf32>,
    } else {
    }
    return
  }
  func.func @transform_0(%arg0: i32, %arg1: i32) -> (i32, i32) {
    %c0_i32 = arith.constant 0 : i32
    %c0_i32_0 = arith.constant 0 : i32
    return %arg0, %c0_i32 : i32, i32
  }
  func.func @transform_1(%arg0: i32, %arg1: i32) -> (i32, i32) {
    %c0_i32 = arith.constant 0 : i32
    %c0_i32_0 = arith.constant 0 : i32
    return %c0_i32, %arg1 : i32, i32
  }
  func.func @transform_2(%arg0: i32, %arg1: i32) -> (i32, i32) {
    %c0_i32 = arith.constant 0 : i32
    %c0_i32_0 = arith.constant 0 : i32
    return %c0_i32, %arg1 : i32, i32
  }
  func.func @transform_3(%arg0: i32, %arg1: i32) -> (i32, i32) {
    %c0_i32 = arith.constant 0 : i32
    %c0_i32_0 = arith.constant 0 : i32
    return %arg1, %c0_i32 : i32, i32
  }
  func.func @transform_4(%arg0: i32, %arg1: i32) -> (i32, i32) {
    %c0_i32 = arith.constant 0 : i32
    %c0_i32_0 = arith.constant 0 : i32
    %c0_i32_1 = arith.constant 0 : i32
    return %c0_i32, %c0_i32_0 : i32, i32
  }
  func.func @transform_5(%arg0: i32, %arg1: i32) -> (i32, i32) {
    %c0_i32 = arith.constant 0 : i32
    %c0_i32_0 = arith.constant 0 : i32
    return %arg0, %c0_i32 : i32, i32
  }
}

</mosaic_0001>

<llo_original>
// kernel: _ffn_forward_2d.1
$region0: #{_ffn_forward_2d.1}
  #allocation0 [shape = 'u32[]', space=smem, size = 0x4, offset = 0x4, fixed_abs, tag = 'smem constant byte address 0x4 - core index']
  #allocation1 [shape = 'u32[72,128]{1,0:T(1,128)}', space=vmem, size = 0x9000, scoped, tag = 'internal scratch']
  %s0 = inlined_call_operand.vmem [shape: f32[16,128], index: 0, kind: input, shape index: {}]
  %s1 = inlined_call_operand.hbm [shape: f32[128,128], index: 1, kind: input, shape index: {}]
  %s2 = inlined_call_operand.vmem [shape: f32[1,128], index: 2, kind: input, shape index: {}]
  %s3 = inlined_call_operand.hbm [shape: f32[128,128], index: 3, kind: input, shape index: {}]
  %s4 = inlined_call_operand.vmem [shape: f32[1,128], index: 4, kind: input, shape index: {}]
  %s5 = inlined_call_operand.hbm [shape: f32[16,128], index: 5, kind: output, shape index: {}]
  %s6 = sld [smem:[#allocation0]]
  $region69: #{_ffn_forward_2d.1} parent=0
    _
  %s8 = ssub.s32 1, %s6
  %s9 = scalar_select 0, %s8, %s6
  $region1: #{_ffn_forward_2d.1} parent=0
    #allocation2 [shape = 'u8[65536]{0}', space=vmem, size = 0x10000, scoped, tag = 'input window, operand 1, single buffered']
    #allocation3 [shape = 's32[2]{0}', space=sflag, size = 0x8, scoped, tag = 'scoped memory for _ffn_forward_2d.1']
    #allocation4 [shape = 's32[2]{0}', space=sflag, size = 0x8, scoped, tag = 'scoped memory for _ffn_forward_2d.1']
    #allocation5 [shape = 'u8[65536]{0}', space=vmem, size = 0x10000, scoped, tag = 'input window, operand 3, single buffered']
    #allocation6 [shape = 's32[1]{0}', space=sflag, size = 0x4, scoped, tag = 'scoped memory for _ffn_forward_2d.1']
    #allocation7 [shape = 'u8[8192]{0}', space=vmem, size = 0x2000, scoped, tag = 'output window, operand 0']
    %10 = vsyncpa [#allocation3], 0
    %11 = vsyncpa [#allocation6], 0
    %12 = vsyncpa [#allocation4], 0
    %s13 = scalar_lea.sflag [#allocation4], 1
    %14 = vsyncpa %s13, 0
    loop: start=0, step=1, limit=4
    $region2: #{_ffn_forward_2d.1} parent=1 // loop_pre_header
      _
    $region3: #{_ffn_forward_2d.1} parent=1 // loop_header
      %s16 = sphi 0, %s20
      %p17 = scmp.ge.s32.totalorder %s16, 4
      %s23 = sphi 0, %s35
      %s24 = sphi 0, %s31
      %s25 = sphi 0, %s23
      %s26 = sphi 0, %s24
      %s27 = sphi 0, %s25
      %s28 = sphi 0, %s26
      %s38 = sphi 0, %s40
      %s41 = sphi 0, %s38
      %s42 = sphi 0, %s41
      %s58 = sphi 0, %s42
      %s64 = sphi 0, %s66
      %s67 = sphi 0, %s64
      %s68 = sphi 0, %s67
      %s84 = sphi 0, %s68
      %s90 = sphi 0, %s92
      %s93 = sphi 0, %s90
      %s94 = sphi 0, %s93
      %s110 = sphi 0, %s94
      %s116 = sphi 0, %s118
      %s119 = sphi 0, %s116
      %s120 = sphi 0, %s119
      %s136 = sphi 0, %s120
      %s140 = sphi 0, %s140
      %s142 = sphi 0, %s140
      %s143 = sphi 0, %s142
      %s157 = sphi 0, %s143
      %s163 = sphi 0, %s165
      %s166 = sphi 0, %s163
      %s167 = sphi 0, %s166
      %s183 = sphi 0, %s167
    $region4: #{_ffn_forward_2d.1} parent=1 // loop_header_branch
      %19 = sbr.rel (%p17) target = $region8
    $region5: #{_ffn_forward_2d.1} parent=1 // loop_body
      %s21 = ssub.s32 %s16, 1
      %s22 = ssub.s32 %s16, 2
      %s29 = sadd.s32 1, %s24
      %p30 = scmp.ge.s32.totalorder %s29, 1
      %s31 = scalar_select %p30, 0, %s29
      %s32 = sadd.s32 1, %s23
      %s33 = scalar_select %p30, %s32, %s23
      %p34 = scmp.ge.s32.totalorder %s33, 2
      %s35 = scalar_select %p34, 0, %s33
      %s36 = ssub.s32 %s23, %s35
      %p37 = scmp.eq.s32.totalorder %s36, 0
      %s39 = sadd.s32 %s38, 1
      %s40 = scalar_select %p37, %s38, %s39
      %p43 = pneg %p37
      %p44 = scmp.eq.s32.totalorder %s16, 1
      %p45 = por %p43, %p44
      %p46 = scmp.ne.s32.totalorder %s38, %s41
      %p47 = scmp.eq.s32.totalorder %s16, 0
      %p48 = por %p46, %p47
      %p49 = scmp.ne.s32.totalorder %s38, %s41
      %p50 = scmp.eq.s32.totalorder %s21, 1
      %p51 = por %p49, %p50
      %p52 = scmp.ne.s32.totalorder %s41, %s42
      %p53 = scmp.eq.s32.totalorder %s21, 0
      %p54 = por %p52, %p53
      %p55 = scmp.ne.s32.totalorder %s41, %s42
      %p56 = scmp.eq.s32.totalorder %s22, 1
      %p57 = por %p55, %p56
      %p59 = scmp.ne.s32.totalorder %s42, %s58
      %p60 = scmp.eq.s32.totalorder %s22, 0
      %p61 = por %p59, %p60
      %s62 = ssub.s32 %s24, %s31
      %p63 = scmp.eq.s32.totalorder %s62, 0
      %s65 = sadd.s32 %s64, 1
      %s66 = scalar_select %p63, %s64, %s65
      %p69 = pneg %p63
      %p70 = scmp.eq.s32.totalorder %s16, 1
      %p71 = por %p69, %p70
      %p72 = scmp.ne.s32.totalorder %s64, %s67
      %p73 = scmp.eq.s32.totalorder %s16, 0
      %p74 = por %p72, %p73
      %p75 = scmp.ne.s32.totalorder %s64, %s67
      %p76 = scmp.eq.s32.totalorder %s21, 1
      %p77 = por %p75, %p76
      %p78 = scmp.ne.s32.totalorder %s67, %s68
      %p79 = scmp.eq.s32.totalorder %s21, 0
      %p80 = por %p78, %p79
      %p81 = scmp.ne.s32.totalorder %s67, %s68
      %p82 = scmp.eq.s32.totalorder %s22, 1
      %p83 = por %p81, %p82
      %p85 = scmp.ne.s32.totalorder %s68, %s84
      %p86 = scmp.eq.s32.totalorder %s22, 0
      %p87 = por %p85, %p86
      %s88 = ssub.s32 %s24, %s31
      %p89 = scmp.eq.s32.totalorder %s88, 0
      %s91 = sadd.s32 %s90, 1
      %s92 = scalar_select %p89, %s90, %s91
      %p95 = pneg %p89
      %p96 = scmp.eq.s32.totalorder %s16, 1
      %p97 = por %p95, %p96
      %p98 = scmp.ne.s32.totalorder %s90, %s93
      %p99 = scmp.eq.s32.totalorder %s16, 0
      %p100 = por %p98, %p99
      %p101 = scmp.ne.s32.totalorder %s90, %s93
      %p102 = scmp.eq.s32.totalorder %s21, 1
      %p103 = por %p101, %p102
      %p104 = scmp.ne.s32.totalorder %s93, %s94
      %p105 = scmp.eq.s32.totalorder %s21, 0
      %p106 = por %p104, %p105
      %p107 = scmp.ne.s32.totalorder %s93, %s94
      %p108 = scmp.eq.s32.totalorder %s22, 1
      %p109 = por %p107, %p108
      %p111 = scmp.ne.s32.totalorder %s94, %s110
      %p112 = scmp.eq.s32.totalorder %s22, 0
      %p113 = por %p111, %p112
      %s114 = ssub.s32 %s24, %s31
      %p115 = scmp.eq.s32.totalorder %s114, 0
      %s117 = sadd.s32 %s116, 1
      %s118 = scalar_select %p115, %s116, %s117
      %p121 = pneg %p115
      %p122 = scmp.eq.s32.totalorder %s16, 1
      %p123 = por %p121, %p122
      %p124 = scmp.ne.s32.totalorder %s116, %s119
      %p125 = scmp.eq.s32.totalorder %s16, 0
      %p126 = por %p124, %p125
      %p127 = scmp.ne.s32.totalorder %s116, %s119
      %p128 = scmp.eq.s32.totalorder %s21, 1
      %p129 = por %p127, %p128
      %p130 = scmp.ne.s32.totalorder %s119, %s120
      %p131 = scmp.eq.s32.totalorder %s21, 0
      %p132 = por %p130, %p131
      %p133 = scmp.ne.s32.totalorder %s119, %s120
      %p134 = scmp.eq.s32.totalorder %s22, 1
      %p135 = por %p133, %p134
      %p137 = scmp.ne.s32.totalorder %s120, %s136
      %p138 = scmp.eq.s32.totalorder %s22, 0
      %p139 = por %p137, %p138
      %s141 = sadd.s32 %s140, 1
      %p144 = scmp.eq.s32.totalorder %s16, 1
      %p145 = scmp.ne.s32.totalorder %s140, %s142
      %p146 = scmp.eq.s32.totalorder %s16, 0
      %p147 = por %p145, %p146
      %p148 = scmp.ne.s32.totalorder %s140, %s142
      %p149 = scmp.eq.s32.totalorder %s21, 1
      %p150 = por %p148, %p149
      %p151 = scmp.ne.s32.totalorder %s142, %s143
      %p152 = scmp.eq.s32.totalorder %s21, 0
      %p153 = por %p151, %p152
      %p154 = scmp.ne.s32.totalorder %s142, %s143
      %p155 = scmp.eq.s32.totalorder %s22, 1
      %p156 = por %p154, %p155
      %p158 = scmp.ne.s32.totalorder %s143, %s157
      %p159 = scmp.eq.s32.totalorder %s22, 0
      %p160 = por %p158, %p159
      %s161 = ssub.s32 %s23, %s35
      %p162 = scmp.eq.s32.totalorder %s161, 0
      %s164 = sadd.s32 %s163, 1
      %s165 = scalar_select %p162, %s163, %s164
      %p168 = pneg %p162
      %p169 = scmp.eq.s32.totalorder %s16, 1
      %p170 = por %p168, %p169
      %p171 = scmp.ne.s32.totalorder %s163, %s166
      %p172 = scmp.eq.s32.totalorder %s16, 0
      %p173 = por %p171, %p172
      %p174 = scmp.ne.s32.totalorder %s163, %s166
      %p175 = scmp.eq.s32.totalorder %s21, 1
      %p176 = por %p174, %p175
      %p177 = scmp.ne.s32.totalorder %s166, %s167
      %p178 = scmp.eq.s32.totalorder %s21, 0
      %p179 = por %p177, %p178
      %p180 = scmp.ne.s32.totalorder %s166, %s167
      %p181 = scmp.eq.s32.totalorder %s22, 1
      %p182 = por %p180, %p181
      %p184 = scmp.ne.s32.totalorder %s167, %s183
      %p185 = scmp.eq.s32.totalorder %s22, 0
      %p186 = por %p184, %p185
      %p187 = scmp.le.s32.totalorder 1, %s16
      %p188 = scmp.lt.s32.totalorder %s16, 3
      %p189 = pnand %p187, %p188
      %p190 = pneg %p189
      // Predicated region
      $region9: #{_ffn_forward_2d.1} parent=5 // pred_check
        _
      $region10: #{_ffn_forward_2d.1} parent=5 // pred_check_branch
        %192 = sbr.rel (%p189) target = $region12
      $region11: #{_ffn_forward_2d.1} parent=5 // pred_region
        %s193 = ssub.s32 %s16, 1
        // Predicated region
        $region13: #{_ffn_forward_2d.1} parent=11 // pred_check
          %p194 = pneg %p80
        $region14: #{_ffn_forward_2d.1} parent=11 // pred_check_branch
          %196 = sbr.rel (%p194) target = $region16
        $region15: #{_ffn_forward_2d.1} parent=11 // pred_region
          %198 = vsyncadd [#allocation3], 0
          %s199 = smul.addr %s26, 8
          %s200 = scalar_lea.hbm %s1, %s199
          %s201 = sshll.u32 %s200, 4
          %s202 = int_to_ptr.hbm [resolvable:$true] %s201
          %s203 = sshll.u32 [#allocation2], 4
          %s204 = int_to_ptr.vmem [resolvable:$true] %s203
          %209 = dma.hbm_to_vmem [thread:$0]  %s202, 2048, %s204, [#allocation3], 128, 128, 8
        $region16: #{_ffn_forward_2d.1} parent=11 // pred_fallthru
          _
        // Predicated region
        $region17: #{_ffn_forward_2d.1} parent=11 // pred_check
          %p210 = pneg %p106
        $region18: #{_ffn_forward_2d.1} parent=11 // pred_check_branch
          %212 = sbr.rel (%p210) target = $region20
        $region19: #{_ffn_forward_2d.1} parent=11 // pred_region
          %p213 = scmp.lt.s32.totalorder %s26, 0
          %s214 = scalar_select %p213, %s26, 0
          %s215 = scalar_lea.vmem %s2, %s214
        $region20: #{_ffn_forward_2d.1} parent=11 // pred_fallthru
          _
        // Predicated region
        $region21: #{_ffn_forward_2d.1} parent=11 // pred_check
          %p216 = pneg %p132
        $region22: #{_ffn_forward_2d.1} parent=11 // pred_check_branch
          %218 = sbr.rel (%p216) target = $region24
        $region23: #{_ffn_forward_2d.1} parent=11 // pred_region
          %s219 = smul.u32 16, %s26
          %221 = vsyncadd [#allocation6], 0
          %s222 = smul.addr %s219, 8
          %s223 = scalar_lea.hbm %s3, %s222
          %s224 = sshll.u32 %s223, 4
          %s225 = int_to_ptr.hbm [resolvable:$true] %s224
          %s226 = sshll.u32 [#allocation5], 4
          %s227 = int_to_ptr.vmem [resolvable:$true] %s226
          %232 = dma.hbm_to_vmem [thread:$0]  %s225, 2048, %s227, [#allocation6], 128, 128, 8
        $region24: #{_ffn_forward_2d.1} parent=11 // pred_fallthru
          _
        // Predicated region
        $region25: #{_ffn_forward_2d.1} parent=11 // pred_check
          %p233 = pneg %p153
        $region26: #{_ffn_forward_2d.1} parent=11 // pred_check_branch
          %235 = sbr.rel (%p233) target = $region28
        $region27: #{_ffn_forward_2d.1} parent=11 // pred_region
          _
        $region28: #{_ffn_forward_2d.1} parent=11 // pred_fallthru
          _
      $region12: #{_ffn_forward_2d.1} parent=5 // pred_fallthru
        _
      %p236 = scmp.lt.s32.totalorder %s16, 2
      // Predicated region
      $region29: #{_ffn_forward_2d.1} parent=5 // pred_check
        %p237 = pneg %p236
      $region30: #{_ffn_forward_2d.1} parent=5 // pred_check_branch
        %239 = sbr.rel (%p237) target = $region32
      $region31: #{_ffn_forward_2d.1} parent=5 // pred_region
        // Predicated region
        $region33: #{_ffn_forward_2d.1} parent=31 // pred_check
          %p240 = pneg %p48
        $region34: #{_ffn_forward_2d.1} parent=31 // pred_check_branch
          %242 = sbr.rel (%p240) target = $region36
        $region35: #{_ffn_forward_2d.1} parent=31 // pred_region
          %p243 = scmp.lt.s32.totalorder %s23, 1
          %s244 = scalar_select %p243, %s23, 1
          %s245 = smul.addr %s244, 8
          %s246 = scalar_lea.vmem %s0, %s245
        $region36: #{_ffn_forward_2d.1} parent=31 // pred_fallthru
          _
      $region32: #{_ffn_forward_2d.1} parent=5 // pred_fallthru
        _
      %p247 = scmp.le.s32.totalorder 1, %s16
      %p248 = scmp.lt.s32.totalorder %s16, 3
      %p249 = pnand %p247, %p248
      %p250 = pneg %p249
      // Predicated region
      $region37: #{_ffn_forward_2d.1} parent=5 // pred_check
        _
      $region38: #{_ffn_forward_2d.1} parent=5 // pred_check_branch
        %252 = sbr.rel (%p249) target = $region40
      $region39: #{_ffn_forward_2d.1} parent=5 // pred_region
        %s253 = ssub.s32 %s16, 1
        // Predicated region
        $region41: #{_ffn_forward_2d.1} parent=39 // pred_check
          %p254 = pneg %p80
        $region42: #{_ffn_forward_2d.1} parent=39 // pred_check_branch
          %256 = sbr.rel (%p254) target = $region44
        $region43: #{_ffn_forward_2d.1} parent=39 // pred_region
          %258 = dma.done [#allocation3], 2048
        $region44: #{_ffn_forward_2d.1} parent=39 // pred_fallthru
          _
        // Predicated region
        $region45: #{_ffn_forward_2d.1} parent=39 // pred_check
          %p259 = pneg %p132
        $region46: #{_ffn_forward_2d.1} parent=39 // pred_check_branch
          %261 = sbr.rel (%p259) target = $region48
        $region47: #{_ffn_forward_2d.1} parent=39 // pred_region
          %263 = dma.done [#allocation6], 2048
        $region48: #{_ffn_forward_2d.1} parent=39 // pred_fallthru
          _
        %p264 = scmp.lt.s32.totalorder %s25, 1
        %s265 = scalar_select %p264, %s25, 1
        %s266 = smul.addr %s265, 8
        %s267 = scalar_lea.vmem %s0, %s266
        %p268 = pneg %p54
        %p269 = pneg %p51
        %p270 = pneg %p80
        %p271 = pneg %p77
        %p272 = scmp.lt.s32.totalorder %s26, 0
        %s273 = scalar_select %p272, %s26, 0
        %s274 = scalar_lea.vmem %s2, %s273
        %p275 = pneg %p106
        %p276 = pneg %p103
        %p277 = pneg %p132
        %p278 = pneg %p129
        %p279 = pneg %p153
        %p280 = pneg %p150
        %p281 = pneg %p179
        %p282 = pneg %p176
        %s283 = sand.u32 %s166, 1
        %s284 = scalar_lea.sflag [#allocation4], %s283
        %s285 = sand.u32 %s166, 1
        %s286 = smul.addr %s285, 8
        %s287 = scalar_lea.vmem [#allocation7], %s286
        %p288 = scmp.lt.s32.totalorder %s25, 1
        %s289 = scalar_select %p288, %s25, 1
        %s290 = smul.addr %s289, 8
        %s291 = scalar_lea.vmem %s0, %s290
        %p292 = scmp.lt.s32.totalorder %s26, 0
        %s293 = scalar_select %p292, %s26, 0
        %s294 = scalar_lea.vmem %s2, %s293
        %s295 = smul.u32 16, %s26
        %p296 = scmp.eq.s32.totalorder %s26, 0
        // Predicated region
        $region49: #{_ffn_forward_2d.1} parent=39 // pred_check
          %p297 = pneg %p296
        $region50: #{_ffn_forward_2d.1} parent=39 // pred_check_branch
          %299 = sbr.rel (%p297) target = $region52
        $region51: #{_ffn_forward_2d.1} parent=39 // pred_region
          %300 = vst [vmem:[%s287] sm:$0xff] 0.0
        $region52: #{_ffn_forward_2d.1} parent=39 // pred_fallthru
          _
        %v301 = vld [vmem:[%s291] sm:$0xff]
        %v302 = vld [vmem:[#allocation2] sm:$0xff]
        %v303 = vld [vmem:[#allocation2 + $0x8] sm:$0xff]
        %v304 = vld [vmem:[#allocation2 + $0x10] sm:$0xff]
        %v305 = vld [vmem:[#allocation2 + $0x18] sm:$0xff]
        %v306 = vld [vmem:[#allocation2 + $0x20] sm:$0xff]
        %v307 = vld [vmem:[#allocation2 + $0x28] sm:$0xff]
        %v308 = vld [vmem:[#allocation2 + $0x30] sm:$0xff]
        %v309 = vld [vmem:[#allocation2 + $0x38] sm:$0xff]
        %v310 = vld [vmem:[#allocation2 + $0x40] sm:$0xff]
        %v311 = vld [vmem:[#allocation2 + $0x48] sm:$0xff]
        %v312 = vld [vmem:[#allocation2 + $0x50] sm:$0xff]
        %v313 = vld [vmem:[#allocation2 + $0x58] sm:$0xff]
        %v314 = vld [vmem:[#allocation2 + $0x60] sm:$0xff]
        %v315 = vld [vmem:[#allocation2 + $0x68] sm:$0xff]
        %v316 = vld [vmem:[#allocation2 + $0x70] sm:$0xff]
        %v317 = vld [vmem:[#allocation2 + $0x78] sm:$0xff]
        %v318 = vld [vmem:[#allocation5] sm:$0xff]
        %v319 = vld [vmem:[#allocation5 + $0x8] sm:$0xff]
        %v320 = vld [vmem:[#allocation5 + $0x10] sm:$0xff]
        %v321 = vld [vmem:[#allocation5 + $0x18] sm:$0xff]
        %v322 = vld [vmem:[#allocation5 + $0x20] sm:$0xff]
        %v323 = vld [vmem:[#allocation5 + $0x28] sm:$0xff]
        %v324 = vld [vmem:[#allocation5 + $0x30] sm:$0xff]
        %v325 = vld [vmem:[#allocation5 + $0x38] sm:$0xff]
        %v326 = vld [vmem:[#allocation5 + $0x40] sm:$0xff]
        %v327 = vld [vmem:[#allocation5 + $0x48] sm:$0xff]
        %v328 = vld [vmem:[#allocation5 + $0x50] sm:$0xff]
        %v329 = vld [vmem:[#allocation5 + $0x58] sm:$0xff]
        %v330 = vld [vmem:[#allocation5 + $0x60] sm:$0xff]
        %v331 = vld [vmem:[#allocation5 + $0x68] sm:$0xff]
        %v332 = vld [vmem:[#allocation5 + $0x70] sm:$0xff]
        %v333 = vld [vmem:[#allocation5 + $0x78] sm:$0xff]
        %v334 = vld [vmem:[%s294] sm:$0x1]
        %v336 = vperm.slane %v334, 0
        %338 = vmatpush.msra.mxu0 %v317
        %339 = vmatpush.msra.mxu0 %v316
        %340 = vmatpush.msra.mxu0 %v315
        %341 = vmatpush.msra.mxu0 %v314
        %342 = vmatpush.msra.mxu0 %v313
        %343 = vmatpush.msra.mxu0 %v312
        %344 = vmatpush.msra.mxu0 %v311
        %345 = vmatpush.msra.mxu0 %v310
        %346 = vmatpush.msra.mxu0 %v309
        %347 = vmatpush.msra.mxu0 %v308
        %348 = vmatpush.msra.mxu0 %v307
        %349 = vmatpush.msra.mxu0 %v306
        %350 = vmatpush.msra.mxu0 %v305
        %351 = vmatpush.msra.mxu0 %v304
        %352 = vmatpush.msra.mxu0 %v303
        %353 = vmatpush.msra.mxu0 %v302
        %354 = vmatmul.f32.gmra.mxu0 %v301
        %v355 = vpop.f32.mrf.mxu0
        %v356 = vadd.f32 %v336, %v355
        %357 = vdwg.mxu0
        %v358 = vmax.f32 %v356, 0.0
        %v359 = vld [vmem:[%s287] sm:$0xff]
        %360 = vmatpush.msra.mxu0 %v333
        %361 = vmatpush.msra.mxu0 %v332
        %362 = vmatpush.msra.mxu0 %v331
        %363 = vmatpush.msra.mxu0 %v330
        %364 = vmatpush.msra.mxu0 %v329
        %365 = vmatpush.msra.mxu0 %v328
        %366 = vmatpush.msra.mxu0 %v327
        %367 = vmatpush.msra.mxu0 %v326
        %368 = vmatpush.msra.mxu0 %v325
        %369 = vmatpush.msra.mxu0 %v324
        %370 = vmatpush.msra.mxu0 %v323
        %371 = vmatpush.msra.mxu0 %v322
        %372 = vmatpush.msra.mxu0 %v321
        %373 = vmatpush.msra.mxu0 %v320
        %374 = vmatpush.msra.mxu0 %v319
        %375 = vmatpush.msra.mxu0 %v318
        %376 = vmatmul.f32.gmra.mxu0 %v358
        %v377 = vpop.f32.mrf.mxu0
        %v378 = vadd.f32 0.0, %v377
        %379 = vdwg.mxu0
        %v380 = vadd.f32 %v359, %v378
        %381 = vst [vmem:[%s287] sm:$0xff] %v380
        // Predicated region
        $region53: #{_ffn_forward_2d.1} parent=39 // pred_check
          %p382 = pneg %p296
        $region54: #{_ffn_forward_2d.1} parent=39 // pred_check_branch
          %384 = sbr.rel (%p382) target = $region56
        $region55: #{_ffn_forward_2d.1} parent=39 // pred_region
          %v385 = vld [vmem:[%s287] sm:$0xff]
          %v386 = vld [vmem:[%s4] sm:$0x1]
          %v388 = vperm.slane %v386, 0
          %v390 = vadd.f32 %v385, %v388
          %391 = vst [vmem:[%s287] sm:$0xff] %v390
        $region56: #{_ffn_forward_2d.1} parent=39 // pred_fallthru
          _
        %s392 = sand.u32 %s166, 1
        %s393 = scalar_lea.sflag [#allocation4], %s392
        %s394 = sand.u32 %s166, 1
        %s395 = smul.addr %s394, 8
        %s396 = scalar_lea.vmem [#allocation7], %s395
        // Predicated region
        $region57: #{_ffn_forward_2d.1} parent=39 // pred_check
          %p397 = pneg %p176
        $region58: #{_ffn_forward_2d.1} parent=39 // pred_check_branch
          %399 = sbr.rel (%p397) target = $region60
        $region59: #{_ffn_forward_2d.1} parent=39 // pred_region
          %401 = vsyncadd %s393, 0
          %s402 = smul.addr %s25, 8
          %s403 = scalar_lea.hbm %s5, %s402
          %s405 = sshll.u32 %s396, 4
          %s406 = int_to_ptr.vmem [resolvable:$true] %s405
          %s407 = sshll.u32 %s403, 4
          %s408 = int_to_ptr.hbm [resolvable:$true] %s407
          %410 = dma.vmem_to_hbm [thread:$0]  %s406, 128, %s408, %s393
        $region60: #{_ffn_forward_2d.1} parent=39 // pred_fallthru
          _
      $region40: #{_ffn_forward_2d.1} parent=5 // pred_fallthru
        _
      %p411 = scmp.le.s32.totalorder 2, %s16
      // Predicated region
      $region61: #{_ffn_forward_2d.1} parent=5 // pred_check
        %p412 = pneg %p411
      $region62: #{_ffn_forward_2d.1} parent=5 // pred_check_branch
        %414 = sbr.rel (%p412) target = $region64
      $region63: #{_ffn_forward_2d.1} parent=5 // pred_region
        %s415 = ssub.s32 %s16, 2
        // Predicated region
        $region65: #{_ffn_forward_2d.1} parent=63 // pred_check
          %p416 = pneg %p182
        $region66: #{_ffn_forward_2d.1} parent=63 // pred_check_branch
          %418 = sbr.rel (%p416) target = $region68
        $region67: #{_ffn_forward_2d.1} parent=63 // pred_region
          %s419 = sand.u32 %s167, 1
          %s420 = scalar_lea.sflag [#allocation4], %s419
          %s421 = sand.u32 %s167, 1
          %s422 = smul.addr %s421, 8
          %s423 = scalar_lea.vmem [#allocation7], %s422
          %425 = dma.done %s420, 128
        $region68: #{_ffn_forward_2d.1} parent=63 // pred_fallthru
          _
      $region64: #{_ffn_forward_2d.1} parent=5 // pred_fallthru
        _
    $region6: #{_ffn_forward_2d.1} parent=1 // loop_footer
      %s20 = sadd.s32 1, %s16
    $region7: #{_ffn_forward_2d.1} parent=1 // loop_footer_branch
      %15 = sbr.rel target = $region3
    $region8: #{_ffn_forward_2d.1} parent=1 // loop_exit
      _
    %426 = vsyncpa [#allocation3], 1
    %s427 = scalar_lea.sflag [#allocation3], 1
    %428 = vsyncpa %s427, 1
    %429 = vsyncpa [#allocation6], 1
    %430 = vsyncpa [#allocation4], 1
    %s431 = scalar_lea.sflag [#allocation4], 1
    %432 = vsyncpa %s431, 1

</llo_original>
